<compile_context>
chip_gen: v7x
topology: tpu7x:2x2x1
jax: 0.10.0
libtpu: 0.0.40
codegen_flags: <defaults>
</compile_context>

<pallas_src>
import functools
import math

import jax
import jax.numpy as jnp
from jax.experimental import pallas as pl
from jax.experimental.pallas import tpu as pltpu


def _qkv_attn_kernel(qkv_ref, o_ref, *, ch, scale_sq):
    # qkv_ref block: (Hb, 3*ch, L) -- q | k | v stacked along the channel axis.
    mm_dtype = jnp.bfloat16 if qkv_ref.dtype == jnp.bfloat16 else jnp.float32

    # Scale folded into q only; scale in f32, then cast to the MXU operand
    # dtype.  Explicit small (ch, T) -> (T, ch) transpose so the QK matmul is
    # a canonical batched MXU matmul.
    qT = (jnp.swapaxes(qkv_ref[:, 0:ch, :].astype(jnp.float32), 1, 2)
          * scale_sq).astype(mm_dtype)                                # (Hb, T, ch)
    k = qkv_ref[:, ch:2 * ch, :].astype(mm_dtype)                     # (Hb, ch, S)
    v = qkv_ref[:, 2 * ch:3 * ch, :].astype(mm_dtype)                 # (Hb, ch, S)

    # w[h,t,s] = sum_c qT[h,t,c] * k[h,c,s]  -- canonical batched matmul,
    # f32 accumulation on the MXU.
    w = jnp.einsum("htc,hcs->hts", qT, k, preferred_element_type=jnp.float32)

    # f32 softmax over the key (lane) axis; normalization is deferred.
    m = jnp.max(w, axis=-1, keepdims=True)
    e = jnp.exp(w - m)                                                # (Hb, T, S) f32
    l = jnp.sum(e, axis=-1, keepdims=True)                            # (Hb, T, 1)

    # a[h,t,c] = sum_s e[h,t,s] * v[h,c,s]: contraction is on the LAST dim of
    # both operands, so the operand that gets transposed for the MXU is the
    # small (ch, S) v tile -- never the (L, L) probability tile.
    a_t = jnp.einsum("hts,hcs->htc", e.astype(mm_dtype), v,
                     preferred_element_type=jnp.float32)              # (Hb, T, ch)

    # Deferred normalization: O(Hb*T*ch) multiply instead of an O(Hb*T*S)
    # divide over the probability tile.
    if mm_dtype == jnp.bfloat16:
        inv_l = pl.reciprocal(l, approx=True)
    else:
        inv_l = 1.0 / l
    a_t = a_t * inv_l

    # One small (T, ch) -> (ch, T) transpose per head to land in NCL layout.
    o_ref[...] = jnp.swapaxes(a_t, 1, 2).astype(o_ref.dtype)


def qkv_attention_legacy(qkv, n_heads):
    """qkv: (bs, 3*n_heads*ch, length). Returns (bs, n_heads*ch, length)."""
    bs, width, length = qkv.shape
    assert width % (3 * n_heads) == 0
    ch = width // (3 * n_heads)
    scale_sq = 1.0 / math.sqrt(ch)          # == (ch ** -0.25) ** 2
    B = bs * n_heads

    # Free reshape: heads become the leading grid axis, channels stay packed.
    qkv_r = qkv.reshape(B, 3 * ch, length)

    itemsize = jnp.dtype(qkv.dtype).itemsize
    mm_itemsize = 2 if qkv.dtype == jnp.bfloat16 else 4

    # Physical VMEM capacity (v7x: 64 MiB, v5e/v6e: 128 MiB), with a fallback.
    try:
        vmem_cap = int(pltpu.get_tpu_info().vmem_capacity_bytes)
    except Exception:
        vmem_cap = 64 * 2**20
    budget = int(0.8 * vmem_cap)

    def footprint(hb):
        in_blk = hb * 3 * ch * length * itemsize       # qkv block
        out_blk = hb * ch * length * itemsize          # output block
        # w + e in f32, plus the mm-dtype cast of e fed to the PV matmul.
        probs = hb * length * length * (2 * 4 + mm_itemsize)
        # q/k/v operand copies, qT, a_t accumulator, output transpose temp.
        small = hb * ch * length * (4 * mm_itemsize + 4 + 2 * 4 + 4)
        return 2 * (in_blk + out_blk) + probs + small  # blocks double-buffered

    # Largest head-block that divides B, fits the budget, and (when possible)
    # leaves >= 2 grid steps so v7x can shard them across both TensorCores.
    hb = 1
    for cand in range(1, B + 1):
        if B % cand != 0:
            continue
        if footprint(cand) > budget:
            continue
        if cand > 1 and B >= 2 and (B // cand) < 2:
            continue
        hb = cand
    grid = (B // hb,)

    vmem_limit = int(min(0.9 * vmem_cap, max(32 * 2**20, 2 * footprint(hb))))

    cost = pl.CostEstimate(
        flops=4 * B * length * length * ch,            # QK^T and PV matmuls
        transcendentals=B * length * length,           # exp in softmax
        bytes_accessed=(B * 3 * ch * length + B * ch * length) * itemsize,
    )

    out = pl.pallas_call(
        functools.partial(_qkv_attn_kernel, ch=ch, scale_sq=scale_sq),
        out_shape=jax.ShapeDtypeStruct((B, ch, length), qkv.dtype),
        grid_spec=pltpu.PrefetchScalarGridSpec(
            num_scalar_prefetch=0,
            grid=grid,
            in_specs=[pl.BlockSpec((hb, 3 * ch, length), lambda b: (b, 0, 0))],
            out_specs=pl.BlockSpec((hb, ch, length), lambda b: (b, 0, 0)),
        ),
        compiler_params=pltpu.CompilerParams(
            dimension_semantics=("parallel",),
            vmem_limit_bytes=vmem_limit,
        ),
        cost_estimate=cost,
    )(qkv_r)

    return out.reshape(bs, n_heads * ch, length)


# ---------------- pure-JAX reference (mirrors the PyTorch module) ----------------
def qkv_attention_reference(qkv, n_heads):
    bs, width, length = qkv.shape
    ch = width // (3 * n_heads)
    q, k, v = jnp.split(qkv.reshape(bs * n_heads, 3 * ch, length), 3, axis=1)
    scale = 1.0 / math.sqrt(math.sqrt(ch))
    w = jnp.einsum("bct,bcs->bts", q * scale, k * scale)
    w = jax.nn.softmax(w.astype(jnp.float32), axis=-1).astype(w.dtype)
    a = jnp.einsum("bts,bcs->bct", w, v)
    return a.reshape(bs, -1, length)


if __name__ == "__main__":
    bs, n_heads, ch, length = 2, 4, 32, 16
    width = 3 * n_heads * ch                      # 384

    key = jax.random.PRNGKey(0)
    qkv = jax.random.normal(key, (bs, width, length), dtype=jnp.float32)

    out = jax.block_until_ready(qkv_attention_legacy(qkv, n_heads))
    ref = jax.block_until_ready(qkv_attention_reference(qkv, n_heads))

    assert out.shape == (bs, n_heads * ch, length), out.shape
    max_err = float(jnp.max(jnp.abs(out - ref)))
    # Slightly looser than before: scale folding + deferred normalization
    # reorder f32 rounding (identical math, ~1e-6 level deviations).
    assert jnp.allclose(out, ref, atol=1e-4, rtol=1e-4), f"max abs err = {max_err}"
    print("KERNEL_OK")
</pallas_src>

<mosaic_0001>
module attributes {stable_mosaic.version = 11 : i64} {
  func.func @_qkv_attn_kernel(%arg0: i32, %arg1: memref<4x96x16xf32, #tpu.memory_space<vmem>>, %arg2: memref<4x32x16xf32, #tpu.memory_space<vmem>>) attributes {dimension_semantics = [#tpu.dimension_semantics<parallel>], iteration_bounds = array<i64: 2>, scalar_prefetch = 0 : i64, scratch_operands = 0 : i64, tpu.core_type = #tpu.core_type<tc>, window_params = [{transform_indices = @transform_0, window_bounds = array<i64: 4, 96, 16>}, {transform_indices = @transform_1, window_bounds = array<i64: 4, 32, 16>}]} {
    %c0 = arith.constant 0 : index
    %c0_0 = arith.constant 0 : index
    %c0_1 = arith.constant 0 : index
    %0 = vector.load %arg1[%c0, %c0_0, %c0_1] : memref<4x96x16xf32, #tpu.memory_space<vmem>>, vector<4x32x16xf32>
    %1 = tpu.transpose %0, [0, 2, 1] : vector<4x32x16xf32> -> vector<4x16x32xf32>
    %cst = arith.constant 0.176776692 : f32
    %2 = vector.broadcast %cst : f32 to vector<4x16x32xf32>
    %3 = arith.mulf %1, %2 : vector<4x16x32xf32>
    %c0_2 = arith.constant 0 : index
    %c32 = arith.constant 32 : index
    %c0_3 = arith.constant 0 : index
    %4 = vector.load %arg1[%c0_2, %c32, %c0_3] : memref<4x96x16xf32, #tpu.memory_space<vmem>>, vector<4x32x16xf32>
    %c0_4 = arith.constant 0 : index
    %c64 = arith.constant 64 : index
    %c0_5 = arith.constant 0 : index
    %5 = vector.load %arg1[%c0_4, %c64, %c0_5] : memref<4x96x16xf32, #tpu.memory_space<vmem>>, vector<4x32x16xf32>
    "tpu.trace_start"() <{level = 10 : i32, message = "htc,hcs->hts"}> : () -> ()
    %cst_6 = arith.constant dense<0.000000e+00> : vector<4x16x16xf32>
    %6 = tpu.matmul %3, %4, %cst_6 {dimension_numbers = #tpu.dot_dimension_numbers<[2], [1], [1], [2], [0, 0, 0, 1, 1, 2], [0], [0]>} : vector<4x16x32xf32>, vector<4x32x16xf32>, vector<4x16x16xf32> -> vector<4x16x16xf32>
    "tpu.trace_stop"() : () -> ()
    %cst_7 = arith.constant dense<0xFF800000> : vector<4x16xf32>
    %7 = vector.multi_reduction <maximumf>, %6, %cst_7 [2] : vector<4x16x16xf32> to vector<4x16xf32>
    %8 = vector.shape_cast %7 : vector<4x16xf32> to vector<4x16x1xf32>
    %9 = vector.broadcast %8 : vector<4x16x1xf32> to vector<4x16x16xf32>
    %10 = arith.subf %6, %9 : vector<4x16x16xf32>
    %11 = math.exp %10 : vector<4x16x16xf32>
    %cst_8 = arith.constant dense<0.000000e+00> : vector<4x16xf32>
    %12 = vector.multi_reduction <add>, %11, %cst_8 [2] : vector<4x16x16xf32> to vector<4x16xf32>
    %13 = vector.shape_cast %12 : vector<4x16xf32> to vector<4x16x1xf32>
    "tpu.trace_start"() <{level = 10 : i32, message = "hts,hcs->htc"}> : () -> ()
    %cst_9 = arith.constant dense<0.000000e+00> : vector<4x16x32xf32>
    %14 = tpu.matmul %11, %5, %cst_9 {dimension_numbers = #tpu.dot_dimension_numbers<[2], [2], [1], [1], [0, 0, 0, 1, 1, 1], [0], [0]>} : vector<4x16x16xf32>, vector<4x32x16xf32>, vector<4x16x32xf32> -> vector<4x16x32xf32>
    "tpu.trace_stop"() : () -> ()
    %cst_10 = arith.constant 1.000000e+00 : f32
    %15 = vector.broadcast %cst_10 : f32 to vector<4x16x1xf32>
    %16 = arith.divf %15, %13 : vector<4x16x1xf32>
    %17 = vector.broadcast %16 : vector<4x16x1xf32> to vector<4x16x32xf32>
    %18 = arith.mulf %14, %17 : vector<4x16x32xf32>
    %19 = tpu.transpose %18, [0, 2, 1] : vector<4x16x32xf32> -> vector<4x32x16xf32>
    %c0_11 = arith.constant 0 : index
    %c0_12 = arith.constant 0 : index
    %c0_13 = arith.constant 0 : index
    %20 = vector.load %arg2[%c0_11, %c0_12, %c0_13] : memref<4x32x16xf32, #tpu.memory_space<vmem>>, vector<4x32x16xf32>
    tpu.vector_store %arg2[%c0_11, %c0_12, %c0_13], %19 {strides = array<i32>} : memref<4x32x16xf32, #tpu.memory_space<vmem>>, vector<4x32x16xf32>,
    return
  }
  func.func @transform_0(%arg0: i32) -> (i32, i32, i32) {
    %c0_i32 = arith.constant 0 : i32
    %c0_i32_0 = arith.constant 0 : i32
    %c0_i32_1 = arith.constant 0 : i32
    return %arg0, %c0_i32, %c0_i32_0 : i32, i32, i32
  }
  func.func @transform_1(%arg0: i32) -> (i32, i32, i32) {
    %c0_i32 = arith.constant 0 : i32
    %c0_i32_0 = arith.constant 0 : i32
    %c0_i32_1 = arith.constant 0 : i32
    return %arg0, %c0_i32, %c0_i32_0 : i32, i32, i32
  }
}

</mosaic_0001>

<llo_original>
// kernel: tpu_custom_call.1
$region0: #{tpu_custom_call.1}
  #allocation0 [shape = 'u32[]', space=smem, size = 0x4, offset = 0x4, fixed_abs, tag = 'smem constant byte address 0x4 - core index']
  #allocation1 [shape = 'u32[144,128]{1,0:T(1,128)}', space=vmem, size = 0x12000, scoped, tag = 'internal scratch']
  %s0 = inlined_call_operand.vmem [shape: f32[8,96,16], index: 0, kind: input, shape index: {}]
  %s1 = inlined_call_operand.vmem [shape: f32[8,32,16], index: 1, kind: output, shape index: {}]
  %s2 = sld [smem:[#allocation0]]
  $region37: #{tpu_custom_call.1} parent=0
    _
  %s4 = ssub.s32 1, %s2
  %s5 = scalar_select 0, %s4, %s2
  loop: start=0, step=1, limit=4
  $region2: #{tpu_custom_call.1} parent=0 // loop_pre_header
    _
  $region3: #{tpu_custom_call.1} parent=0 // loop_header
    %s7 = sphi 0, %s11
    %p8 = scmp.ge.s32.totalorder %s7, 4
    %s17 = sphi 0, %s19
    %s20 = sphi 0, %s17
    %s21 = sphi 0, %s20
    %s37 = sphi 0, %s21
    %s43 = sphi 0, %s45
    %s46 = sphi 0, %s43
    %s47 = sphi 0, %s46
    %s63 = sphi 0, %s47
  $region4: #{tpu_custom_call.1} parent=0 // loop_header_branch
    %10 = sbr.rel (%p8) target = $region8
  $region5: #{tpu_custom_call.1} parent=0 // loop_body
    %s12 = ssub.s32 %s7, 1
    %s13 = ssub.s32 %s7, 2
    %s14 = sadd.s32 %s7, 1
    %s15 = ssub.s32 %s7, %s14
    %p16 = scmp.eq.s32.totalorder %s15, 0
    %s18 = sadd.s32 %s17, 1
    %s19 = scalar_select %p16, %s17, %s18
    %p22 = pneg %p16
    %p23 = scmp.eq.s32.totalorder %s7, 1
    %p24 = por %p22, %p23
    %p25 = scmp.ne.s32.totalorder %s17, %s20
    %p26 = scmp.eq.s32.totalorder %s7, 0
    %p27 = por %p25, %p26
    %p28 = scmp.ne.s32.totalorder %s17, %s20
    %p29 = scmp.eq.s32.totalorder %s12, 1
    %p30 = por %p28, %p29
    %p31 = scmp.ne.s32.totalorder %s20, %s21
    %p32 = scmp.eq.s32.totalorder %s12, 0
    %p33 = por %p31, %p32
    %p34 = scmp.ne.s32.totalorder %s20, %s21
    %p35 = scmp.eq.s32.totalorder %s13, 1
    %p36 = por %p34, %p35
    %p38 = scmp.ne.s32.totalorder %s21, %s37
    %p39 = scmp.eq.s32.totalorder %s13, 0
    %p40 = por %p38, %p39
    %s41 = ssub.s32 %s7, %s14
    %p42 = scmp.eq.s32.totalorder %s41, 0
    %s44 = sadd.s32 %s43, 1
    %s45 = scalar_select %p42, %s43, %s44
    %p48 = pneg %p42
    %p49 = scmp.eq.s32.totalorder %s7, 1
    %p50 = por %p48, %p49
    %p51 = scmp.ne.s32.totalorder %s43, %s46
    %p52 = scmp.eq.s32.totalorder %s7, 0
    %p53 = por %p51, %p52
    %p54 = scmp.ne.s32.totalorder %s43, %s46
    %p55 = scmp.eq.s32.totalorder %s12, 1
    %p56 = por %p54, %p55
    %p57 = scmp.ne.s32.totalorder %s46, %s47
    %p58 = scmp.eq.s32.totalorder %s12, 0
    %p59 = por %p57, %p58
    %p60 = scmp.ne.s32.totalorder %s46, %s47
    %p61 = scmp.eq.s32.totalorder %s13, 1
    %p62 = por %p60, %p61
    %p64 = scmp.ne.s32.totalorder %s47, %s63
    %p65 = scmp.eq.s32.totalorder %s13, 0
    %p66 = por %p64, %p65
    %p67 = scmp.le.s32.totalorder 1, %s7
    %p68 = scmp.lt.s32.totalorder %s7, 3
    %p69 = pnand %p67, %p68
    %p70 = pneg %p69
    // Predicated region
    $region9: #{tpu_custom_call.1} parent=5 // pred_check
      _
    $region10: #{tpu_custom_call.1} parent=5 // pred_check_branch
      %72 = sbr.rel (%p69) target = $region12
    $region11: #{tpu_custom_call.1} parent=5 // pred_region
      %s73 = ssub.s32 %s7, 1
    $region12: #{tpu_custom_call.1} parent=5 // pred_fallthru
      _
    %p74 = scmp.lt.s32.totalorder %s7, 2
    // Predicated region
    $region13: #{tpu_custom_call.1} parent=5 // pred_check
      %p75 = pneg %p74
    $region14: #{tpu_custom_call.1} parent=5 // pred_check_branch
      %77 = sbr.rel (%p75) target = $region16
    $region15: #{tpu_custom_call.1} parent=5 // pred_region
      // Predicated region
      $region17: #{tpu_custom_call.1} parent=15 // pred_check
        %p78 = pneg %p27
      $region18: #{tpu_custom_call.1} parent=15 // pred_check_branch
        %80 = sbr.rel (%p78) target = $region20
      $region19: #{tpu_custom_call.1} parent=15 // pred_region
        %s81 = smul.u32 4, %s7
        %p82 = scmp.lt.s32.totalorder %s81, 7
        %s83 = scalar_select %p82, %s81, 7
        %s84 = smul.addr %s83, 12
        %s85 = smul.addr %s84, 8
        %s86 = scalar_lea.vmem %s0, %s85
        %s87 = smul.u32 4, %s7
      $region20: #{tpu_custom_call.1} parent=15 // pred_fallthru
        _
    $region16: #{tpu_custom_call.1} parent=5 // pred_fallthru
      _
    %p88 = scmp.le.s32.totalorder 1, %s7
    %p89 = scmp.lt.s32.totalorder %s7, 3
    %p90 = pnand %p88, %p89
    %p91 = pneg %p90
    // Predicated region
    $region21: #{tpu_custom_call.1} parent=5 // pred_check
      _
    $region22: #{tpu_custom_call.1} parent=5 // pred_check_branch
      %93 = sbr.rel (%p90) target = $region24
    $region23: #{tpu_custom_call.1} parent=5 // pred_region
      %s94 = ssub.s32 %s7, 1
      %s95 = smul.u32 4, %s12
      %p96 = scmp.lt.s32.totalorder %s95, 7
      %s97 = scalar_select %p96, %s95, 7
      %s98 = smul.addr %s97, 12
      %s99 = smul.addr %s98, 8
      %s100 = scalar_lea.vmem %s0, %s99
      %p101 = pneg %p33
      %p102 = pneg %p30
      %p103 = pneg %p59
      %p104 = pneg %p56
      %s105 = smul.u32 4, %s12
      %p106 = scmp.lt.s32.totalorder %s105, 7
      %s107 = scalar_select %p106, %s105, 7
      %s108 = smul.addr %s107, 4
      %s109 = smul.addr %s108, 8
      %s110 = scalar_lea.vmem %s1, %s109
      %s111 = smul.u32 4, %s12
      %p112 = scmp.lt.s32.totalorder %s111, 7
      %s113 = scalar_select %p112, %s111, 7
      %s114 = smul.addr %s113, 12
      %s115 = smul.addr %s114, 8
      %s116 = scalar_lea.vmem %s0, %s115
      %s117 = smul.u32 4, %s12
      %s118 = smul.u32 4, %s12
      %p119 = scmp.lt.s32.totalorder %s118, 7
      %s120 = scalar_select %p119, %s118, 7
      %s121 = smul.addr %s120, 4
      %s122 = smul.addr %s121, 8
      %s123 = scalar_lea.vmem %s1, %s122
      %s124 = smul.u32 4, %s12
      %v125 = vld [vmem:[%s116] sm:$0xff]
      %v126 = vld [vmem:[%s116 + $0x8] sm:$0xff]
      %v127 = vld [vmem:[%s116 + $0x10] sm:$0xff]
      %v128 = vld [vmem:[%s116 + $0x18] sm:$0xff]
      %v129 = vld [vmem:[%s116 + $0x60] sm:$0xff]
      %v130 = vld [vmem:[%s116 + $0x68] sm:$0xff]
      %v131 = vld [vmem:[%s116 + $0x70] sm:$0xff]
      %v132 = vld [vmem:[%s116 + $0x78] sm:$0xff]
      %v133 = vld [vmem:[%s116 + $0xc0] sm:$0xff]
      %v134 = vld [vmem:[%s116 + $0xc8] sm:$0xff]
      %v135 = vld [vmem:[%s116 + $0xd0] sm:$0xff]
      %v136 = vld [vmem:[%s116 + $0xd8] sm:$0xff]
      %v137 = vld [vmem:[%s116 + $0x120] sm:$0xff]
      %v138 = vld [vmem:[%s116 + $0x128] sm:$0xff]
      %v139 = vld [vmem:[%s116 + $0x130] sm:$0xff]
      %v140 = vld [vmem:[%s116 + $0x138] sm:$0xff]
      %141 = vxpose.xlu0.b32.start [1/16] %v125, 128
      %142 = vxpose.xlu0.b32.cont [2/16] %v126, 128
      %143 = vxpose.xlu0.b32.cont [3/16] %v127, 128
      %144 = vxpose.xlu0.b32.cont [4/16] %v128, 128
      %145 = vxpose.xlu0.b32.cont [5/16] 0.0, 128
      %146 = vxpose.xlu0.b32.cont [6/16] 0.0, 128
      %147 = vxpose.xlu0.b32.cont [7/16] 0.0, 128
      %148 = vxpose.xlu0.b32.cont [8/16] 0.0, 128
      %149 = vxpose.xlu0.b32.cont [9/16] 0.0, 128
      %150 = vxpose.xlu0.b32.cont [10/16] 0.0, 128
      %151 = vxpose.xlu0.b32.cont [11/16] 0.0, 128
      %152 = vxpose.xlu0.b32.cont [12/16] 0.0, 128
      %153 = vxpose.xlu0.b32.cont [13/16] 0.0, 128
      %154 = vxpose.xlu0.b32.cont [14/16] 0.0, 128
      %155 = vxpose.xlu0.b32.cont [15/16] 0.0, 128
      %156 = vxpose.xlu0.b32.end [16/16] 0.0, 128
      %v157 = vpop.trf.xlu0
      %v158 = vpop.trf.xlu0
      %v159 = vpop.trf.xlu0
      %v160 = vpop.trf.xlu0
      %v161 = vpop.trf.xlu0
      %v162 = vpop.trf.xlu0
      %v163 = vpop.trf.xlu0
      %v164 = vpop.trf.xlu0
      %v165 = vpop.trf.xlu0
      %v166 = vpop.trf.xlu0
      %v167 = vpop.trf.xlu0
      %v168 = vpop.trf.xlu0
      %v169 = vpop.trf.xlu0
      %v170 = vpop.trf.xlu0
      %v171 = vpop.trf.xlu0
      %v172 = vpop.trf.xlu0
      %173 = vxpose.xlu0.b32.start [1/16] %v129, 128
      %174 = vxpose.xlu0.b32.cont [2/16] %v130, 128
      %175 = vxpose.xlu0.b32.cont [3/16] %v131, 128
      %176 = vxpose.xlu0.b32.cont [4/16] %v132, 128
      %177 = vxpose.xlu0.b32.cont [5/16] 0.0, 128
      %178 = vxpose.xlu0.b32.cont [6/16] 0.0, 128
      %179 = vxpose.xlu0.b32.cont [7/16] 0.0, 128
      %180 = vxpose.xlu0.b32.cont [8/16] 0.0, 128
      %181 = vxpose.xlu0.b32.cont [9/16] 0.0, 128
      %182 = vxpose.xlu0.b32.cont [10/16] 0.0, 128
      %183 = vxpose.xlu0.b32.cont [11/16] 0.0, 128
      %184 = vxpose.xlu0.b32.cont [12/16] 0.0, 128
      %185 = vxpose.xlu0.b32.cont [13/16] 0.0, 128
      %186 = vxpose.xlu0.b32.cont [14/16] 0.0, 128
      %187 = vxpose.xlu0.b32.cont [15/16] 0.0, 128
      %188 = vxpose.xlu0.b32.end [16/16] 0.0, 128
      %v189 = vpop.trf.xlu0
      %v190 = vpop.trf.xlu0
      %v191 = vpop.trf.xlu0
      %v192 = vpop.trf.xlu0
      %v193 = vpop.trf.xlu0
      %v194 = vpop.trf.xlu0
      %v195 = vpop.trf.xlu0
      %v196 = vpop.trf.xlu0
      %v197 = vpop.trf.xlu0
      %v198 = vpop.trf.xlu0
      %v199 = vpop.trf.xlu0
      %v200 = vpop.trf.xlu0
      %v201 = vpop.trf.xlu0
      %v202 = vpop.trf.xlu0
      %v203 = vpop.trf.xlu0
      %v204 = vpop.trf.xlu0
      %205 = vxpose.xlu0.b32.start [1/16] %v133, 128
      %206 = vxpose.xlu0.b32.cont [2/16] %v134, 128
      %207 = vxpose.xlu0.b32.cont [3/16] %v135, 128
      %208 = vxpose.xlu0.b32.cont [4/16] %v136, 128
      %209 = vxpose.xlu0.b32.cont [5/16] 0.0, 128
      %210 = vxpose.xlu0.b32.cont [6/16] 0.0, 128
      %211 = vxpose.xlu0.b32.cont [7/16] 0.0, 128
      %212 = vxpose.xlu0.b32.cont [8/16] 0.0, 128
      %213 = vxpose.xlu0.b32.cont [9/16] 0.0, 128
      %214 = vxpose.xlu0.b32.cont [10/16] 0.0, 128
      %215 = vxpose.xlu0.b32.cont [11/16] 0.0, 128
      %216 = vxpose.xlu0.b32.cont [12/16] 0.0, 128
      %217 = vxpose.xlu0.b32.cont [13/16] 0.0, 128
      %218 = vxpose.xlu0.b32.cont [14/16] 0.0, 128
      %219 = vxpose.xlu0.b32.cont [15/16] 0.0, 128
      %220 = vxpose.xlu0.b32.end [16/16] 0.0, 128
      %v221 = vpop.trf.xlu0
      %v222 = vpop.trf.xlu0
      %v223 = vpop.trf.xlu0
      %v224 = vpop.trf.xlu0
      %v225 = vpop.trf.xlu0
      %v226 = vpop.trf.xlu0
      %v227 = vpop.trf.xlu0
      %v228 = vpop.trf.xlu0
      %v229 = vpop.trf.xlu0
      %v230 = vpop.trf.xlu0
      %v231 = vpop.trf.xlu0
      %v232 = vpop.trf.xlu0
      %v233 = vpop.trf.xlu0
      %v234 = vpop.trf.xlu0
      %v235 = vpop.trf.xlu0
      %v236 = vpop.trf.xlu0
      %237 = vxpose.xlu0.b32.start [1/16] %v137, 128
      %238 = vxpose.xlu0.b32.cont [2/16] %v138, 128
      %239 = vxpose.xlu0.b32.cont [3/16] %v139, 128
      %240 = vxpose.xlu0.b32.cont [4/16] %v140, 128
      %241 = vxpose.xlu0.b32.cont [5/16] 0.0, 128
      %242 = vxpose.xlu0.b32.cont [6/16] 0.0, 128
      %243 = vxpose.xlu0.b32.cont [7/16] 0.0, 128
      %244 = vxpose.xlu0.b32.cont [8/16] 0.0, 128
      %245 = vxpose.xlu0.b32.cont [9/16] 0.0, 128
      %246 = vxpose.xlu0.b32.cont [10/16] 0.0, 128
      %247 = vxpose.xlu0.b32.cont [11/16] 0.0, 128
      %248 = vxpose.xlu0.b32.cont [12/16] 0.0, 128
      %249 = vxpose.xlu0.b32.cont [13/16] 0.0, 128
      %250 = vxpose.xlu0.b32.cont [14/16] 0.0, 128
      %251 = vxpose.xlu0.b32.cont [15/16] 0.0, 128
      %252 = vxpose.xlu0.b32.end [16/16] 0.0, 128
      %v253 = vpop.trf.xlu0
      %v254 = vpop.trf.xlu0
      %v255 = vpop.trf.xlu0
      %v256 = vpop.trf.xlu0
      %v257 = vpop.trf.xlu0
      %v258 = vpop.trf.xlu0
      %v259 = vpop.trf.xlu0
      %v260 = vpop.trf.xlu0
      %v261 = vpop.trf.xlu0
      %v262 = vpop.trf.xlu0
      %v263 = vpop.trf.xlu0
      %v264 = vpop.trf.xlu0
      %v265 = vpop.trf.xlu0
      %v266 = vpop.trf.xlu0
      %v267 = vpop.trf.xlu0
      %v268 = vpop.trf.xlu0
      %v269 = vmul.f32 %v157, 0.17677669
      %v270 = vmul.f32 %v158, 0.17677669
      %v271 = vmul.f32 %v189, 0.17677669
      %v272 = vmul.f32 %v190, 0.17677669
      %v273 = vmul.f32 %v221, 0.17677669
      %v274 = vmul.f32 %v222, 0.17677669
      %v275 = vmul.f32 %v253, 0.17677669
      %v276 = vmul.f32 %v254, 0.17677669
      %v277 = vld [vmem:[%s116 + $0x20] sm:$0xff]
      %v278 = vld [vmem:[%s116 + $0x28] sm:$0xff]
      %v279 = vld [vmem:[%s116 + $0x30] sm:$0xff]
      %v280 = vld [vmem:[%s116 + $0x38] sm:$0xff]
      %v281 = vld [vmem:[%s116 + $0x80] sm:$0xff]
      %v282 = vld [vmem:[%s116 + $0x88] sm:$0xff]
      %v283 = vld [vmem:[%s116 + $0x90] sm:$0xff]
      %v284 = vld [vmem:[%s116 + $0x98] sm:$0xff]
      %v285 = vld [vmem:[%s116 + $0xe0] sm:$0xff]
      %v286 = vld [vmem:[%s116 + $0xe8] sm:$0xff]
      %v287 = vld [vmem:[%s116 + $0xf0] sm:$0xff]
      %v288 = vld [vmem:[%s116 + $0xf8] sm:$0xff]
      %v289 = vld [vmem:[%s116 + $0x140] sm:$0xff]
      %v290 = vld [vmem:[%s116 + $0x148] sm:$0xff]
      %v291 = vld [vmem:[%s116 + $0x150] sm:$0xff]
      %v292 = vld [vmem:[%s116 + $0x158] sm:$0xff]
      %v293 = vld [vmem:[%s116 + $0x40] sm:$0xff]
      %v294 = vld [vmem:[%s116 + $0x48] sm:$0xff]
      %v295 = vld [vmem:[%s116 + $0x50] sm:$0xff]
      %v296 = vld [vmem:[%s116 + $0x58] sm:$0xff]
      %v297 = vld [vmem:[%s116 + $0xa0] sm:$0xff]
      %v298 = vld [vmem:[%s116 + $0xa8] sm:$0xff]
      %v299 = vld [vmem:[%s116 + $0xb0] sm:$0xff]
      %v300 = vld [vmem:[%s116 + $0xb8] sm:$0xff]
      %v301 = vld [vmem:[%s116 + $0x100] sm:$0xff]
      %v302 = vld [vmem:[%s116 + $0x108] sm:$0xff]
      %v303 = vld [vmem:[%s116 + $0x110] sm:$0xff]
      %v304 = vld [vmem:[%s116 + $0x118] sm:$0xff]
      %v305 = vld [vmem:[%s116 + $0x160] sm:$0xff]
      %v306 = vld [vmem:[%s116 + $0x168] sm:$0xff]
      %v307 = vld [vmem:[%s116 + $0x170] sm:$0xff]
      %v308 = vld [vmem:[%s116 + $0x178] sm:$0xff]
      %vm309 = vcmask 261120
      %v311 = vsel %vm309, %v269, 0
      %v314 = vsel %vm309, %v270, 0
      %316 = vmatprep.subr.mxu0 0.0
      %317 = vmatpush1.msra.mxu0 %v277
      %318 = vmatprep.subr.mxu0 0.0
      %319 = vmatpush1.msra.mxu0 %v278
      %320 = vmatprep.subr.mxu0 0.0
      %321 = vmatpush1.msra.mxu0 %v279
      %322 = vmatprep.subr.mxu0 0.0
      %323 = vmatpush1.msra.mxu0 %v280
      %324 = vmatprep.subr.mxu0 0.0
      %325 = vmatpush1.msra.mxu0 0.0
      %326 = vmatprep.subr.mxu0 0.0
      %327 = vmatpush1.msra.mxu0 0.0
      %328 = vmatprep.subr.mxu0 0.0
      %329 = vmatpush1.msra.mxu0 0.0
      %330 = vmatprep.subr.mxu0 0.0
      %331 = vmatpush1.msra.mxu0 0.0
      %332 = vmatprep.subr.mxu0 0.0
      %333 = vmatpush1.msra.mxu0 0.0
      %334 = vmatprep.subr.mxu0 0.0
      %335 = vmatpush1.msra.mxu0 0.0
      %336 = vmatprep.subr.mxu0 0.0
      %337 = vmatpush1.msra.mxu0 0.0
      %338 = vmatprep.subr.mxu0 0.0
      %339 = vmatpush1.msra.mxu0 0.0
      %340 = vmatprep.subr.mxu0 0.0
      %341 = vmatpush1.msra.mxu0 0.0
      %342 = vmatprep.subr.mxu0 0.0
      %343 = vmatpush1.msra.mxu0 0.0
      %344 = vmatprep.subr.mxu0 0.0
      %345 = vmatpush1.msra.mxu0 0.0
      %346 = vmatprep.subr.mxu0 0.0
      %347 = vmatpush1.msra.mxu0 0.0
      %348 = vmatprep.subr.mxu0 0.0
      %349 = vmatpush1.msra.mxu0 0.0
      %350 = vmatprep.subr.mxu0 0.0
      %351 = vmatpush1.msra.mxu0 0.0
      %352 = vmatprep.subr.mxu0 0.0
      %353 = vmatpush1.msra.mxu0 0.0
      %354 = vmatprep.subr.mxu0 0.0
      %355 = vmatpush1.msra.mxu0 0.0
      %356 = vmatprep.subr.mxu0 0.0
      %357 = vmatpush1.msra.mxu0 0.0
      %358 = vmatprep.subr.mxu0 0.0
      %359 = vmatpush1.msra.mxu0 0.0
      %360 = vmatprep.subr.mxu0 0.0
      %361 = vmatpush1.msra.mxu0 0.0
      %362 = vmatprep.subr.mxu0 0.0
      %363 = vmatpush1.msra.mxu0 0.0
      %364 = vmatprep.subr.mxu0 0.0
      %365 = vmatpush1.msra.mxu0 0.0
      %366 = vmatprep.subr.mxu0 0.0
      %367 = vmatpush1.msra.mxu0 0.0
      %368 = vmatprep.subr.mxu0 0.0
      %369 = vmatpush1.msra.mxu0 0.0
      %370 = vmatprep.subr.mxu0 0.0
      %371 = vmatpush1.msra.mxu0 0.0
      %372 = vmatprep.subr.mxu0 0.0
      %373 = vmatpush1.msra.mxu0 0.0
      %374 = vmatprep.subr.mxu0 0.0
      %375 = vmatpush1.msra.mxu0 0.0
      %376 = vmatprep.subr.mxu0 0.0
      %377 = vmatpush1.msra.mxu0 0.0
      %378 = vmatprep.subr.mxu0 0.0
      %379 = vmatpush1.msra.mxu0 0.0
      %380 = vmatprep.mubr.f32.mxu0 0.0
      %381 = vmatmul.mubr.f32.gmra.mrb[0].mxu0 %v311
      %v382 = vpop.f32.mrb[0].mxu0
      %v383 = vadd.f32 0.0, %v382
      %v384 = vpop.f32.mrb[0].mxu0
      %385 = vmatprep.mubr.f32.mxu0 0.0
      %386 = vmatmul.mubr.f32.gmra.mrb[0].mxu0 %v314
      %v387 = vpop.f32.mrb[0].mxu0
      %v388 = vadd.f32 0.0, %v387
      %v389 = vpop.f32.mrb[0].mxu0
      %390 = vdwg.mxu0
      %v392 = vsel %vm309, %v271, 0
      %v395 = vsel %vm309, %v272, 0
      %397 = vmatprep.subr.mxu0 0.0
      %398 = vmatpush1.msra.mxu0 %v281
      %399 = vmatprep.subr.mxu0 0.0
      %400 = vmatpush1.msra.mxu0 %v282
      %401 = vmatprep.subr.mxu0 0.0
      %402 = vmatpush1.msra.mxu0 %v283
      %403 = vmatprep.subr.mxu0 0.0
      %404 = vmatpush1.msra.mxu0 %v284
      %405 = vmatprep.subr.mxu0 0.0
      %406 = vmatpush1.msra.mxu0 0.0
      %407 = vmatprep.subr.mxu0 0.0
      %408 = vmatpush1.msra.mxu0 0.0
      %409 = vmatprep.subr.mxu0 0.0
      %410 = vmatpush1.msra.mxu0 0.0
      %411 = vmatprep.subr.mxu0 0.0
      %412 = vmatpush1.msra.mxu0 0.0
      %413 = vmatprep.subr.mxu0 0.0
      %414 = vmatpush1.msra.mxu0 0.0
      %415 = vmatprep.subr.mxu0 0.0
      %416 = vmatpush1.msra.mxu0 0.0
      %417 = vmatprep.subr.mxu0 0.0
      %418 = vmatpush1.msra.mxu0 0.0
      %419 = vmatprep.subr.mxu0 0.0
      %420 = vmatpush1.msra.mxu0 0.0
      %421 = vmatprep.subr.mxu0 0.0
      %422 = vmatpush1.msra.mxu0 0.0
      %423 = vmatprep.subr.mxu0 0.0
      %424 = vmatpush1.msra.mxu0 0.0
      %425 = vmatprep.subr.mxu0 0.0
      %426 = vmatpush1.msra.mxu0 0.0
      %427 = vmatprep.subr.mxu0 0.0
      %428 = vmatpush1.msra.mxu0 0.0
      %429 = vmatprep.subr.mxu0 0.0
      %430 = vmatpush1.msra.mxu0 0.0
      %431 = vmatprep.subr.mxu0 0.0
      %432 = vmatpush1.msra.mxu0 0.0
      %433 = vmatprep.subr.mxu0 0.0
      %434 = vmatpush1.msra.mxu0 0.0
      %435 = vmatprep.subr.mxu0 0.0
      %436 = vmatpush1.msra.mxu0 0.0
      %437 = vmatprep.subr.mxu0 0.0
      %438 = vmatpush1.msra.mxu0 0.0
      %439 = vmatprep.subr.mxu0 0.0
      %440 = vmatpush1.msra.mxu0 0.0
      %441 = vmatprep.subr.mxu0 0.0
      %442 = vmatpush1.msra.mxu0 0.0
      %443 = vmatprep.subr.mxu0 0.0
      %444 = vmatpush1.msra.mxu0 0.0
      %445 = vmatprep.subr.mxu0 0.0
      %446 = vmatpush1.msra.mxu0 0.0
      %447 = vmatprep.subr.mxu0 0.0
      %448 = vmatpush1.msra.mxu0 0.0
      %449 = vmatprep.subr.mxu0 0.0
      %450 = vmatpush1.msra.mxu0 0.0
      %451 = vmatprep.subr.mxu0 0.0
      %452 = vmatpush1.msra.mxu0 0.0
      %453 = vmatprep.subr.mxu0 0.0
      %454 = vmatpush1.msra.mxu0 0.0
      %455 = vmatprep.subr.mxu0 0.0
      %456 = vmatpush1.msra.mxu0 0.0
      %457 = vmatprep.subr.mxu0 0.0
      %458 = vmatpush1.msra.mxu0 0.0
      %459 = vmatprep.subr.mxu0 0.0
      %460 = vmatpush1.msra.mxu0 0.0
      %461 = vmatprep.mubr.f32.mxu0 0.0
      %462 = vmatmul.mubr.f32.gmra.mrb[0].mxu0 %v392
      %v463 = vpop.f32.mrb[0].mxu0
      %v464 = vadd.f32 0.0, %v463
      %v465 = vpop.f32.mrb[0].mxu0
      %466 = vmatprep.mubr.f32.mxu0 0.0
      %467 = vmatmul.mubr.f32.gmra.mrb[0].mxu0 %v395
      %v468 = vpop.f32.mrb[0].mxu0
      %v469 = vadd.f32 0.0, %v468
      %v470 = vpop.f32.mrb[0].mxu0
      %471 = vdwg.mxu0
      %v473 = vsel %vm309, %v273, 0
      %v476 = vsel %vm309, %v274, 0
      %478 = vmatprep.subr.mxu0 0.0
      %479 = vmatpush1.msra.mxu0 %v285
      %480 = vmatprep.subr.mxu0 0.0
      %481 = vmatpush1.msra.mxu0 %v286
      %482 = vmatprep.subr.mxu0 0.0
      %483 = vmatpush1.msra.mxu0 %v287
      %484 = vmatprep.subr.mxu0 0.0
      %485 = vmatpush1.msra.mxu0 %v288
      %486 = vmatprep.subr.mxu0 0.0
      %487 = vmatpush1.msra.mxu0 0.0
      %488 = vmatprep.subr.mxu0 0.0
      %489 = vmatpush1.msra.mxu0 0.0
      %490 = vmatprep.subr.mxu0 0.0
      %491 = vmatpush1.msra.mxu0 0.0
      %492 = vmatprep.subr.mxu0 0.0
      %493 = vmatpush1.msra.mxu0 0.0
      %494 = vmatprep.subr.mxu0 0.0
      %495 = vmatpush1.msra.mxu0 0.0
      %496 = vmatprep.subr.mxu0 0.0
      %497 = vmatpush1.msra.mxu0 0.0
      %498 = vmatprep.subr.mxu0 0.0
      %499 = vmatpush1.msra.mxu0 0.0
      %500 = vmatprep.subr.mxu0 0.0
      %501 = vmatpush1.msra.mxu0 0.0
      %502 = vmatprep.subr.mxu0 0.0
      %503 = vmatpush1.msra.mxu0 0.0
      %504 = vmatprep.subr.mxu0 0.0
      %505 = vmatpush1.msra.mxu0 0.0
      %506 = vmatprep.subr.mxu0 0.0
      %507 = vmatpush1.msra.mxu0 0.0
      %508 = vmatprep.subr.mxu0 0.0
      %509 = vmatpush1.msra.mxu0 0.0
      %510 = vmatprep.subr.mxu0 0.0
      %511 = vmatpush1.msra.mxu0 0.0
      %512 = vmatprep.subr.mxu0 0.0
      %513 = vmatpush1.msra.mxu0 0.0
      %514 = vmatprep.subr.mxu0 0.0
      %515 = vmatpush1.msra.mxu0 0.0
      %516 = vmatprep.subr.mxu0 0.0
      %517 = vmatpush1.msra.mxu0 0.0
      %518 = vmatprep.subr.mxu0 0.0
      %519 = vmatpush1.msra.mxu0 0.0
      %520 = vmatprep.subr.mxu0 0.0
      %521 = vmatpush1.msra.mxu0 0.0
      %522 = vmatprep.subr.mxu0 0.0
      %523 = vmatpush1.msra.mxu0 0.0
      %524 = vmatprep.subr.mxu0 0.0
      %525 = vmatpush1.msra.mxu0 0.0
      %526 = vmatprep.subr.mxu0 0.0
      %527 = vmatpush1.msra.mxu0 0.0
      %528 = vmatprep.subr.mxu0 0.0
      %529 = vmatpush1.msra.mxu0 0.0
      %530 = vmatprep.subr.mxu0 0.0
      %531 = vmatpush1.msra.mxu0 0.0
      %532 = vmatprep.subr.mxu0 0.0
      %533 = vmatpush1.msra.mxu0 0.0
      %534 = vmatprep.subr.mxu0 0.0
      %535 = vmatpush1.msra.mxu0 0.0
      %536 = vmatprep.subr.mxu0 0.0
      %537 = vmatpush1.msra.mxu0 0.0
      %538 = vmatprep.subr.mxu0 0.0
      %539 = vmatpush1.msra.mxu0 0.0
      %540 = vmatprep.subr.mxu0 0.0
      %541 = vmatpush1.msra.mxu0 0.0
      %542 = vmatprep.mubr.f32.mxu0 0.0
      %543 = vmatmul.mubr.f32.gmra.mrb[0].mxu0 %v473
      %v544 = vpop.f32.mrb[0].mxu0
      %v545 = vadd.f32 0.0, %v544
      %v546 = vpop.f32.mrb[0].mxu0
      %547 = vmatprep.mubr.f32.mxu0 0.0
      %548 = vmatmul.mubr.f32.gmra.mrb[0].mxu0 %v476
      %v549 = vpop.f32.mrb[0].mxu0
      %v550 = vadd.f32 0.0, %v549
      %v551 = vpop.f32.mrb[0].mxu0
      %552 = vdwg.mxu0
      %v554 = vsel %vm309, %v275, 0
      %v557 = vsel %vm309, %v276, 0
      %559 = vmatprep.subr.mxu0 0.0
      %560 = vmatpush1.msra.mxu0 %v289
      %561 = vmatprep.subr.mxu0 0.0
      %562 = vmatpush1.msra.mxu0 %v290
      %563 = vmatprep.subr.mxu0 0.0
      %564 = vmatpush1.msra.mxu0 %v291
      %565 = vmatprep.subr.mxu0 0.0
      %566 = vmatpush1.msra.mxu0 %v292
      %567 = vmatprep.subr.mxu0 0.0
      %568 = vmatpush1.msra.mxu0 0.0
      %569 = vmatprep.subr.mxu0 0.0
      %570 = vmatpush1.msra.mxu0 0.0
      %571 = vmatprep.subr.mxu0 0.0
      %572 = vmatpush1.msra.mxu0 0.0
      %573 = vmatprep.subr.mxu0 0.0
      %574 = vmatpush1.msra.mxu0 0.0
      %575 = vmatprep.subr.mxu0 0.0
      %576 = vmatpush1.msra.mxu0 0.0
      %577 = vmatprep.subr.mxu0 0.0
      %578 = vmatpush1.msra.mxu0 0.0
      %579 = vmatprep.subr.mxu0 0.0
      %580 = vmatpush1.msra.mxu0 0.0
      %581 = vmatprep.subr.mxu0 0.0
      %582 = vmatpush1.msra.mxu0 0.0
      %583 = vmatprep.subr.mxu0 0.0
      %584 = vmatpush1.msra.mxu0 0.0
      %585 = vmatprep.subr.mxu0 0.0
      %586 = vmatpush1.msra.mxu0 0.0
      %587 = vmatprep.subr.mxu0 0.0
      %588 = vmatpush1.msra.mxu0 0.0
      %589 = vmatprep.subr.mxu0 0.0
      %590 = vmatpush1.msra.mxu0 0.0
      %591 = vmatprep.subr.mxu0 0.0
      %592 = vmatpush1.msra.mxu0 0.0
      %593 = vmatprep.subr.mxu0 0.0
      %594 = vmatpush1.msra.mxu0 0.0
      %595 = vmatprep.subr.mxu0 0.0
      %596 = vmatpush1.msra.mxu0 0.0
      %597 = vmatprep.subr.mxu0 0.0
      %598 = vmatpush1.msra.mxu0 0.0
      %599 = vmatprep.subr.mxu0 0.0
      %600 = vmatpush1.msra.mxu0 0.0
      %601 = vmatprep.subr.mxu0 0.0
      %602 = vmatpush1.msra.mxu0 0.0
      %603 = vmatprep.subr.mxu0 0.0
      %604 = vmatpush1.msra.mxu0 0.0
      %605 = vmatprep.subr.mxu0 0.0
      %606 = vmatpush1.msra.mxu0 0.0
      %607 = vmatprep.subr.mxu0 0.0
      %608 = vmatpush1.msra.mxu0 0.0
      %609 = vmatprep.subr.mxu0 0.0
      %610 = vmatpush1.msra.mxu0 0.0
      %611 = vmatprep.subr.mxu0 0.0
      %612 = vmatpush1.msra.mxu0 0.0
      %613 = vmatprep.subr.mxu0 0.0
      %614 = vmatpush1.msra.mxu0 0.0
      %615 = vmatprep.subr.mxu0 0.0
      %616 = vmatpush1.msra.mxu0 0.0
      %617 = vmatprep.subr.mxu0 0.0
      %618 = vmatpush1.msra.mxu0 0.0
      %619 = vmatprep.subr.mxu0 0.0
      %620 = vmatpush1.msra.mxu0 0.0
      %621 = vmatprep.subr.mxu0 0.0
      %622 = vmatpush1.msra.mxu0 0.0
      %623 = vmatprep.mubr.f32.mxu0 0.0
      %624 = vmatmul.mubr.f32.gmra.mrb[0].mxu0 %v554
      %v625 = vpop.f32.mrb[0].mxu0
      %v626 = vadd.f32 0.0, %v625
      %v627 = vpop.f32.mrb[0].mxu0
      %628 = vmatprep.mubr.f32.mxu0 0.0
      %629 = vmatmul.mubr.f32.gmra.mrb[0].mxu0 %v557
      %v630 = vpop.f32.mrb[0].mxu0
      %v631 = vadd.f32 0.0, %v630
      %v632 = vpop.f32.mrb[0].mxu0
      %633 = vdwg.mxu0
      %vm634 = vcmask 130048
      %v635 = vsel %vm634, %v383, -inf
      %636 = vmax.xlane.f32.xlu0 %v635
      %v637 = vpop.xlane.xlu0 %636
      %v638 = vsel %vm634, %v388, -inf
      %639 = vmax.xlane.f32.xlu0 %v638
      %v640 = vpop.xlane.xlu0 %639
      %v641 = vsel %vm634, %v464, -inf
      %642 = vmax.xlane.f32.xlu0 %v641
      %v643 = vpop.xlane.xlu0 %642
      %v644 = vsel %vm634, %v469, -inf
      %645 = vmax.xlane.f32.xlu0 %v644
      %v646 = vpop.xlane.xlu0 %645
      %v647 = vsel %vm634, %v545, -inf
      %648 = vmax.xlane.f32.xlu0 %v647
      %v649 = vpop.xlane.xlu0 %648
      %v650 = vsel %vm634, %v550, -inf
      %651 = vmax.xlane.f32.xlu0 %v650
      %v652 = vpop.xlane.xlu0 %651
      %v653 = vsel %vm634, %v626, -inf
      %654 = vmax.xlane.f32.xlu0 %v653
      %v655 = vpop.xlane.xlu0 %654
      %v656 = vsel %vm634, %v631, -inf
      %657 = vmax.xlane.f32.xlu0 %v656
      %v658 = vpop.xlane.xlu0 %657
      %v659 = vsub.f32 %v383, %v637
      %v660 = vsub.f32 %v388, %v640
      %v661 = vsub.f32 %v464, %v643
      %v662 = vsub.f32 %v469, %v646
      %v663 = vsub.f32 %v545, %v649
      %v664 = vsub.f32 %v550, %v652
      %v665 = vsub.f32 %v626, %v655
      %v666 = vsub.f32 %v631, %v658
      %v667 = vmul.f32 %v659, 1.442695
      %v668 = vpow.pop %v667
      %v669 = vmul.f32 %v660, 1.442695
      %v670 = vpow.pop %v669
      %v671 = vmul.f32 %v661, 1.442695
      %v672 = vpow.pop %v671
      %v673 = vmul.f32 %v662, 1.442695
      %v674 = vpow.pop %v673
      %v675 = vmul.f32 %v663, 1.442695
      %v676 = vpow.pop %v675
      %v677 = vmul.f32 %v664, 1.442695
      %v678 = vpow.pop %v677
      %v679 = vmul.f32 %v665, 1.442695
      %v680 = vpow.pop %v679
      %v681 = vmul.f32 %v666, 1.442695
      %v682 = vpow.pop %v681
      %v683 = vsel %vm634, %v668, 0.0
      %684 = vadd.xlane.f32.xlu0 %v683
      %v685 = vpop.xlane.xlu0 %684
      %v686 = vsel %vm634, %v670, 0.0
      %687 = vadd.xlane.f32.xlu0 %v686
      %v688 = vpop.xlane.xlu0 %687
      %v689 = vsel %vm634, %v672, 0.0
      %690 = vadd.xlane.f32.xlu0 %v689
      %v691 = vpop.xlane.xlu0 %690
      %v692 = vsel %vm634, %v674, 0.0
      %693 = vadd.xlane.f32.xlu0 %v692
      %v694 = vpop.xlane.xlu0 %693
      %v695 = vsel %vm634, %v676, 0.0
      %696 = vadd.xlane.f32.xlu0 %v695
      %v697 = vpop.xlane.xlu0 %696
      %v698 = vsel %vm634, %v678, 0.0
      %699 = vadd.xlane.f32.xlu0 %v698
      %v700 = vpop.xlane.xlu0 %699
      %v701 = vsel %vm634, %v680, 0.0
      %702 = vadd.xlane.f32.xlu0 %v701
      %v703 = vpop.xlane.xlu0 %702
      %v704 = vsel %vm634, %v682, 0.0
      %705 = vadd.xlane.f32.xlu0 %v704
      %v706 = vpop.xlane.xlu0 %705
      %v708 = vsel %vm634, %v668, 0
      %v711 = vsel %vm634, %v670, 0
      %v714 = vsel %vm634, %v293, 0
      %v717 = vsel %vm634, %v294, 0
      %v720 = vsel %vm634, %v295, 0
      %v723 = vsel %vm634, %v296, 0
      %725 = vmatprep.subr.mxu0 0.0
      %726 = vmatpush1.xpose.msra.mxu0 %v714
      %727 = vmatprep.subr.mxu0 0.0
      %728 = vmatpush1.xpose.msra.mxu0 %v717
      %729 = vmatprep.subr.mxu0 0.0
      %730 = vmatpush1.xpose.msra.mxu0 %v720
      %731 = vmatprep.subr.mxu0 0.0
      %732 = vmatpush1.xpose.msra.mxu0 %v723
      %733 = vmatprep.subr.mxu0 0.0
      %734 = vmatpush1.xpose.msra.mxu0 0.0
      %735 = vmatprep.subr.mxu0 0.0
      %736 = vmatpush1.xpose.msra.mxu0 0.0
      %737 = vmatprep.subr.mxu0 0.0
      %738 = vmatpush1.xpose.msra.mxu0 0.0
      %739 = vmatprep.subr.mxu0 0.0
      %740 = vmatpush1.xpose.msra.mxu0 0.0
      %741 = vmatprep.subr.mxu0 0.0
      %742 = vmatpush1.xpose.msra.mxu0 0.0
      %743 = vmatprep.subr.mxu0 0.0
      %744 = vmatpush1.xpose.msra.mxu0 0.0
      %745 = vmatprep.subr.mxu0 0.0
      %746 = vmatpush1.xpose.msra.mxu0 0.0
      %747 = vmatprep.subr.mxu0 0.0
      %748 = vmatpush1.xpose.msra.mxu0 0.0
      %749 = vmatprep.subr.mxu0 0.0
      %750 = vmatpush1.xpose.msra.mxu0 0.0
      %751 = vmatprep.subr.mxu0 0.0
      %752 = vmatpush1.xpose.msra.mxu0 0.0
      %753 = vmatprep.subr.mxu0 0.0
      %754 = vmatpush1.xpose.msra.mxu0 0.0
      %755 = vmatprep.subr.mxu0 0.0
      %756 = vmatpush1.xpose.msra.mxu0 0.0
      %757 = vmatprep.subr.mxu0 0.0
      %758 = vmatpush1.xpose.msra.mxu0 0.0
      %759 = vmatprep.subr.mxu0 0.0
      %760 = vmatpush1.xpose.msra.mxu0 0.0
      %761 = vmatprep.subr.mxu0 0.0
      %762 = vmatpush1.xpose.msra.mxu0 0.0
      %763 = vmatprep.subr.mxu0 0.0
      %764 = vmatpush1.xpose.msra.mxu0 0.0
      %765 = vmatprep.subr.mxu0 0.0
      %766 = vmatpush1.xpose.msra.mxu0 0.0
      %767 = vmatprep.subr.mxu0 0.0
      %768 = vmatpush1.xpose.msra.mxu0 0.0
      %769 = vmatprep.subr.mxu0 0.0
      %770 = vmatpush1.xpose.msra.mxu0 0.0
      %771 = vmatprep.subr.mxu0 0.0
      %772 = vmatpush1.xpose.msra.mxu0 0.0
      %773 = vmatprep.subr.mxu0 0.0
      %774 = vmatpush1.xpose.msra.mxu0 0.0
      %775 = vmatprep.subr.mxu0 0.0
      %776 = vmatpush1.xpose.msra.mxu0 0.0
      %777 = vmatprep.subr.mxu0 0.0
      %778 = vmatpush1.xpose.msra.mxu0 0.0
      %779 = vmatprep.subr.mxu0 0.0
      %780 = vmatpush1.xpose.msra.mxu0 0.0
      %781 = vmatprep.subr.mxu0 0.0
      %782 = vmatpush1.xpose.msra.mxu0 0.0
      %783 = vmatprep.subr.mxu0 0.0
      %784 = vmatpush1.xpose.msra.mxu0 0.0
      %785 = vmatprep.subr.mxu0 0.0
      %786 = vmatpush1.xpose.msra.mxu0 0.0
      %787 = vmatprep.subr.mxu0 0.0
      %788 = vmatpush1.xpose.msra.mxu0 0.0
      %789 = vmatprep.mubr.f32.mxu0 0.0
      %790 = vmatmul.mubr.f32.gmra.mrb[0].mxu0 %v708
      %v791 = vpop.f32.mrb[0].mxu0
      %v792 = vadd.f32 0.0, %v791
      %v793 = vpop.f32.mrb[0].mxu0
      %794 = vmatprep.mubr.f32.mxu0 0.0
      %795 = vmatmul.mubr.f32.gmra.mrb[0].mxu0 %v711
      %v796 = vpop.f32.mrb[0].mxu0
      %v797 = vadd.f32 0.0, %v796
      %v798 = vpop.f32.mrb[0].mxu0
      %799 = vdwg.mxu0
      %v801 = vsel %vm634, %v672, 0
      %v804 = vsel %vm634, %v674, 0
      %v807 = vsel %vm634, %v297, 0
      %v810 = vsel %vm634, %v298, 0
      %v813 = vsel %vm634, %v299, 0
      %v816 = vsel %vm634, %v300, 0
      %818 = vmatprep.subr.mxu0 0.0
      %819 = vmatpush1.xpose.msra.mxu0 %v807
      %820 = vmatprep.subr.mxu0 0.0
      %821 = vmatpush1.xpose.msra.mxu0 %v810
      %822 = vmatprep.subr.mxu0 0.0
      %823 = vmatpush1.xpose.msra.mxu0 %v813
      %824 = vmatprep.subr.mxu0 0.0
      %825 = vmatpush1.xpose.msra.mxu0 %v816
      %826 = vmatprep.subr.mxu0 0.0
      %827 = vmatpush1.xpose.msra.mxu0 0.0
      %828 = vmatprep.subr.mxu0 0.0
      %829 = vmatpush1.xpose.msra.mxu0 0.0
      %830 = vmatprep.subr.mxu0 0.0
      %831 = vmatpush1.xpose.msra.mxu0 0.0
      %832 = vmatprep.subr.mxu0 0.0
      %833 = vmatpush1.xpose.msra.mxu0 0.0
      %834 = vmatprep.subr.mxu0 0.0
      %835 = vmatpush1.xpose.msra.mxu0 0.0
      %836 = vmatprep.subr.mxu0 0.0
      %837 = vmatpush1.xpose.msra.mxu0 0.0
      %838 = vmatprep.subr.mxu0 0.0
      %839 = vmatpush1.xpose.msra.mxu0 0.0
      %840 = vmatprep.subr.mxu0 0.0
      %841 = vmatpush1.xpose.msra.mxu0 0.0
      %842 = vmatprep.subr.mxu0 0.0
      %843 = vmatpush1.xpose.msra.mxu0 0.0
      %844 = vmatprep.subr.mxu0 0.0
      %845 = vmatpush1.xpose.msra.mxu0 0.0
      %846 = vmatprep.subr.mxu0 0.0
      %847 = vmatpush1.xpose.msra.mxu0 0.0
      %848 = vmatprep.subr.mxu0 0.0
      %849 = vmatpush1.xpose.msra.mxu0 0.0
      %850 = vmatprep.subr.mxu0 0.0
      %851 = vmatpush1.xpose.msra.mxu0 0.0
      %852 = vmatprep.subr.mxu0 0.0
      %853 = vmatpush1.xpose.msra.mxu0 0.0
      %854 = vmatprep.subr.mxu0 0.0
      %855 = vmatpush1.xpose.msra.mxu0 0.0
      %856 = vmatprep.subr.mxu0 0.0
      %857 = vmatpush1.xpose.msra.mxu0 0.0
      %858 = vmatprep.subr.mxu0 0.0
      %859 = vmatpush1.xpose.msra.mxu0 0.0
      %860 = vmatprep.subr.mxu0 0.0
      %861 = vmatpush1.xpose.msra.mxu0 0.0
      %862 = vmatprep.subr.mxu0 0.0
      %863 = vmatpush1.xpose.msra.mxu0 0.0
      %864 = vmatprep.subr.mxu0 0.0
      %865 = vmatpush1.xpose.msra.mxu0 0.0
      %866 = vmatprep.subr.mxu0 0.0
      %867 = vmatpush1.xpose.msra.mxu0 0.0
      %868 = vmatprep.subr.mxu0 0.0
      %869 = vmatpush1.xpose.msra.mxu0 0.0
      %870 = vmatprep.subr.mxu0 0.0
      %871 = vmatpush1.xpose.msra.mxu0 0.0
      %872 = vmatprep.subr.mxu0 0.0
      %873 = vmatpush1.xpose.msra.mxu0 0.0
      %874 = vmatprep.subr.mxu0 0.0
      %875 = vmatpush1.xpose.msra.mxu0 0.0
      %876 = vmatprep.subr.mxu0 0.0
      %877 = vmatpush1.xpose.msra.mxu0 0.0
      %878 = vmatprep.subr.mxu0 0.0
      %879 = vmatpush1.xpose.msra.mxu0 0.0
      %880 = vmatprep.subr.mxu0 0.0
      %881 = vmatpush1.xpose.msra.mxu0 0.0
      %882 = vmatprep.mubr.f32.mxu0 0.0
      %883 = vmatmul.mubr.f32.gmra.mrb[0].mxu0 %v801
      %v884 = vpop.f32.mrb[0].mxu0
      %v885 = vadd.f32 0.0, %v884
      %v886 = vpop.f32.mrb[0].mxu0
      %887 = vmatprep.mubr.f32.mxu0 0.0
      %888 = vmatmul.mubr.f32.gmra.mrb[0].mxu0 %v804
      %v889 = vpop.f32.mrb[0].mxu0
      %v890 = vadd.f32 0.0, %v889
      %v891 = vpop.f32.mrb[0].mxu0
      %892 = vdwg.mxu0
      %v894 = vsel %vm634, %v676, 0
      %v897 = vsel %vm634, %v678, 0
      %v900 = vsel %vm634, %v301, 0
      %v903 = vsel %vm634, %v302, 0
      %v906 = vsel %vm634, %v303, 0
      %v909 = vsel %vm634, %v304, 0
      %911 = vmatprep.subr.mxu0 0.0
      %912 = vmatpush1.xpose.msra.mxu0 %v900
      %913 = vmatprep.subr.mxu0 0.0
      %914 = vmatpush1.xpose.msra.mxu0 %v903
      %915 = vmatprep.subr.mxu0 0.0
      %916 = vmatpush1.xpose.msra.mxu0 %v906
      %917 = vmatprep.subr.mxu0 0.0
      %918 = vmatpush1.xpose.msra.mxu0 %v909
      %919 = vmatprep.subr.mxu0 0.0
      %920 = vmatpush1.xpose.msra.mxu0 0.0
      %921 = vmatprep.subr.mxu0 0.0
      %922 = vmatpush1.xpose.msra.mxu0 0.0
      %923 = vmatprep.subr.mxu0 0.0
      %924 = vmatpush1.xpose.msra.mxu0 0.0
      %925 = vmatprep.subr.mxu0 0.0
      %926 = vmatpush1.xpose.msra.mxu0 0.0
      %927 = vmatprep.subr.mxu0 0.0
      %928 = vmatpush1.xpose.msra.mxu0 0.0
      %929 = vmatprep.subr.mxu0 0.0
      %930 = vmatpush1.xpose.msra.mxu0 0.0
      %931 = vmatprep.subr.mxu0 0.0
      %932 = vmatpush1.xpose.msra.mxu0 0.0
      %933 = vmatprep.subr.mxu0 0.0
      %934 = vmatpush1.xpose.msra.mxu0 0.0
      %935 = vmatprep.subr.mxu0 0.0
      %936 = vmatpush1.xpose.msra.mxu0 0.0
      %937 = vmatprep.subr.mxu0 0.0
      %938 = vmatpush1.xpose.msra.mxu0 0.0
      %939 = vmatprep.subr.mxu0 0.0
      %940 = vmatpush1.xpose.msra.mxu0 0.0
      %941 = vmatprep.subr.mxu0 0.0
      %942 = vmatpush1.xpose.msra.mxu0 0.0
      %943 = vmatprep.subr.mxu0 0.0
      %944 = vmatpush1.xpose.msra.mxu0 0.0
      %945 = vmatprep.subr.mxu0 0.0
      %946 = vmatpush1.xpose.msra.mxu0 0.0
      %947 = vmatprep.subr.mxu0 0.0
      %948 = vmatpush1.xpose.msra.mxu0 0.0
      %949 = vmatprep.subr.mxu0 0.0
      %950 = vmatpush1.xpose.msra.mxu0 0.0
      %951 = vmatprep.subr.mxu0 0.0
      %952 = vmatpush1.xpose.msra.mxu0 0.0
      %953 = vmatprep.subr.mxu0 0.0
      %954 = vmatpush1.xpose.msra.mxu0 0.0
      %955 = vmatprep.subr.mxu0 0.0
      %956 = vmatpush1.xpose.msra.mxu0 0.0
      %957 = vmatprep.subr.mxu0 0.0
      %958 = vmatpush1.xpose.msra.mxu0 0.0
      %959 = vmatprep.subr.mxu0 0.0
      %960 = vmatpush1.xpose.msra.mxu0 0.0
      %961 = vmatprep.subr.mxu0 0.0
      %962 = vmatpush1.xpose.msra.mxu0 0.0
      %963 = vmatprep.subr.mxu0 0.0
      %964 = vmatpush1.xpose.msra.mxu0 0.0
      %965 = vmatprep.subr.mxu0 0.0
      %966 = vmatpush1.xpose.msra.mxu0 0.0
      %967 = vmatprep.subr.mxu0 0.0
      %968 = vmatpush1.xpose.msra.mxu0 0.0
      %969 = vmatprep.subr.mxu0 0.0
      %970 = vmatpush1.xpose.msra.mxu0 0.0
      %971 = vmatprep.subr.mxu0 0.0
      %972 = vmatpush1.xpose.msra.mxu0 0.0
      %973 = vmatprep.subr.mxu0 0.0
      %974 = vmatpush1.xpose.msra.mxu0 0.0
      %975 = vmatprep.mubr.f32.mxu0 0.0
      %976 = vmatmul.mubr.f32.gmra.mrb[0].mxu0 %v894
      %v977 = vpop.f32.mrb[0].mxu0
      %v978 = vadd.f32 0.0, %v977
      %v979 = vpop.f32.mrb[0].mxu0
      %980 = vmatprep.mubr.f32.mxu0 0.0
      %981 = vmatmul.mubr.f32.gmra.mrb[0].mxu0 %v897
      %v982 = vpop.f32.mrb[0].mxu0
      %v983 = vadd.f32 0.0, %v982
      %v984 = vpop.f32.mrb[0].mxu0
      %985 = vdwg.mxu0
      %v987 = vsel %vm634, %v680, 0
      %v990 = vsel %vm634, %v682, 0
      %v993 = vsel %vm634, %v305, 0
      %v996 = vsel %vm634, %v306, 0
      %v999 = vsel %vm634, %v307, 0
      %v1002 = vsel %vm634, %v308, 0
      %1004 = vmatprep.subr.mxu0 0.0
      %1005 = vmatpush1.xpose.msra.mxu0 %v993
      %1006 = vmatprep.subr.mxu0 0.0
      %1007 = vmatpush1.xpose.msra.mxu0 %v996
      %1008 = vmatprep.subr.mxu0 0.0
      %1009 = vmatpush1.xpose.msra.mxu0 %v999
      %1010 = vmatprep.subr.mxu0 0.0
      %1011 = vmatpush1.xpose.msra.mxu0 %v1002
      %1012 = vmatprep.subr.mxu0 0.0
      %1013 = vmatpush1.xpose.msra.mxu0 0.0
      %1014 = vmatprep.subr.mxu0 0.0
      %1015 = vmatpush1.xpose.msra.mxu0 0.0
      %1016 = vmatprep.subr.mxu0 0.0
      %1017 = vmatpush1.xpose.msra.mxu0 0.0
      %1018 = vmatprep.subr.mxu0 0.0
      %1019 = vmatpush1.xpose.msra.mxu0 0.0
      %1020 = vmatprep.subr.mxu0 0.0
      %1021 = vmatpush1.xpose.msra.mxu0 0.0
      %1022 = vmatprep.subr.mxu0 0.0
      %1023 = vmatpush1.xpose.msra.mxu0 0.0
      %1024 = vmatprep.subr.mxu0 0.0
      %1025 = vmatpush1.xpose.msra.mxu0 0.0
      %1026 = vmatprep.subr.mxu0 0.0
      %1027 = vmatpush1.xpose.msra.mxu0 0.0
      %1028 = vmatprep.subr.mxu0 0.0
      %1029 = vmatpush1.xpose.msra.mxu0 0.0
      %1030 = vmatprep.subr.mxu0 0.0
      %1031 = vmatpush1.xpose.msra.mxu0 0.0
      %1032 = vmatprep.subr.mxu0 0.0
      %1033 = vmatpush1.xpose.msra.mxu0 0.0
      %1034 = vmatprep.subr.mxu0 0.0
      %1035 = vmatpush1.xpose.msra.mxu0 0.0
      %1036 = vmatprep.subr.mxu0 0.0
      %1037 = vmatpush1.xpose.msra.mxu0 0.0
      %1038 = vmatprep.subr.mxu0 0.0
      %1039 = vmatpush1.xpose.msra.mxu0 0.0
      %1040 = vmatprep.subr.mxu0 0.0
      %1041 = vmatpush1.xpose.msra.mxu0 0.0
      %1042 = vmatprep.subr.mxu0 0.0
      %1043 = vmatpush1.xpose.msra.mxu0 0.0
      %1044 = vmatprep.subr.mxu0 0.0
      %1045 = vmatpush1.xpose.msra.mxu0 0.0
      %1046 = vmatprep.subr.mxu0 0.0
      %1047 = vmatpush1.xpose.msra.mxu0 0.0
      %1048 = vmatprep.subr.mxu0 0.0
      %1049 = vmatpush1.xpose.msra.mxu0 0.0
      %1050 = vmatprep.subr.mxu0 0.0
      %1051 = vmatpush1.xpose.msra.mxu0 0.0
      %1052 = vmatprep.subr.mxu0 0.0
      %1053 = vmatpush1.xpose.msra.mxu0 0.0
      %1054 = vmatprep.subr.mxu0 0.0
      %1055 = vmatpush1.xpose.msra.mxu0 0.0
      %1056 = vmatprep.subr.mxu0 0.0
      %1057 = vmatpush1.xpose.msra.mxu0 0.0
      %1058 = vmatprep.subr.mxu0 0.0
      %1059 = vmatpush1.xpose.msra.mxu0 0.0
      %1060 = vmatprep.subr.mxu0 0.0
      %1061 = vmatpush1.xpose.msra.mxu0 0.0
      %1062 = vmatprep.subr.mxu0 0.0
      %1063 = vmatpush1.xpose.msra.mxu0 0.0
      %1064 = vmatprep.subr.mxu0 0.0
      %1065 = vmatpush1.xpose.msra.mxu0 0.0
      %1066 = vmatprep.subr.mxu0 0.0
      %1067 = vmatpush1.xpose.msra.mxu0 0.0
      %1068 = vmatprep.mubr.f32.mxu0 0.0
      %1069 = vmatmul.mubr.f32.gmra.mrb[0].mxu0 %v987
      %v1070 = vpop.f32.mrb[0].mxu0
      %v1071 = vadd.f32 0.0, %v1070
      %v1072 = vpop.f32.mrb[0].mxu0
      %1073 = vmatprep.mubr.f32.mxu0 0.0
      %1074 = vmatmul.mubr.f32.gmra.mrb[0].mxu0 %v990
      %v1075 = vpop.f32.mrb[0].mxu0
      %v1076 = vadd.f32 0.0, %v1075
      %v1077 = vpop.f32.mrb[0].mxu0
      %1078 = vdwg.mxu0
      %v1079 = vrcp.pop %v685
      %v1080 = vmul.f32 1.0, %v1079
      %v1081 = vrcp.pop %v688
      %v1082 = vmul.f32 1.0, %v1081
      %v1083 = vrcp.pop %v691
      %v1084 = vmul.f32 1.0, %v1083
      %v1085 = vrcp.pop %v694
      %v1086 = vmul.f32 1.0, %v1085
      %v1087 = vrcp.pop %v697
      %v1088 = vmul.f32 1.0, %v1087
      %v1089 = vrcp.pop %v700
      %v1090 = vmul.f32 1.0, %v1089
      %v1091 = vrcp.pop %v703
      %v1092 = vmul.f32 1.0, %v1091
      %v1093 = vrcp.pop %v706
      %v1094 = vmul.f32 1.0, %v1093
      %v1095 = vmul.f32 %v792, %v1080
      %v1096 = vmul.f32 %v797, %v1082
      %v1097 = vmul.f32 %v885, %v1084
      %v1098 = vmul.f32 %v890, %v1086
      %v1099 = vmul.f32 %v978, %v1088
      %v1100 = vmul.f32 %v983, %v1090
      %v1101 = vmul.f32 %v1071, %v1092
      %v1102 = vmul.f32 %v1076, %v1094
      %1103 = vxpose.xlu0.b32.start [1/16] %v1095, 128
      %1104 = vxpose.xlu0.b32.cont [2/16] %v1096, 128
      %1105 = vxpose.xlu0.b32.cont [3/16] 0.0, 128
      %1106 = vxpose.xlu0.b32.cont [4/16] 0.0, 128
      %1107 = vxpose.xlu0.b32.cont [5/16] 0.0, 128
      %1108 = vxpose.xlu0.b32.cont [6/16] 0.0, 128
      %1109 = vxpose.xlu0.b32.cont [7/16] 0.0, 128
      %1110 = vxpose.xlu0.b32.cont [8/16] 0.0, 128
      %1111 = vxpose.xlu0.b32.cont [9/16] 0.0, 128
      %1112 = vxpose.xlu0.b32.cont [10/16] 0.0, 128
      %1113 = vxpose.xlu0.b32.cont [11/16] 0.0, 128
      %1114 = vxpose.xlu0.b32.cont [12/16] 0.0, 128
      %1115 = vxpose.xlu0.b32.cont [13/16] 0.0, 128
      %1116 = vxpose.xlu0.b32.cont [14/16] 0.0, 128
      %1117 = vxpose.xlu0.b32.cont [15/16] 0.0, 128
      %1118 = vxpose.xlu0.b32.end [16/16] 0.0, 128
      %v1119 = vpop.trf.xlu0
      %v1120 = vpop.trf.xlu0
      %v1121 = vpop.trf.xlu0
      %v1122 = vpop.trf.xlu0
      %v1123 = vpop.trf.xlu0
      %v1124 = vpop.trf.xlu0
      %v1125 = vpop.trf.xlu0
      %v1126 = vpop.trf.xlu0
      %v1127 = vpop.trf.xlu0
      %v1128 = vpop.trf.xlu0
      %v1129 = vpop.trf.xlu0
      %v1130 = vpop.trf.xlu0
      %v1131 = vpop.trf.xlu0
      %v1132 = vpop.trf.xlu0
      %v1133 = vpop.trf.xlu0
      %v1134 = vpop.trf.xlu0
      %1135 = vxpose.xlu0.b32.start [1/16] %v1097, 128
      %1136 = vxpose.xlu0.b32.cont [2/16] %v1098, 128
      %1137 = vxpose.xlu0.b32.cont [3/16] 0.0, 128
      %1138 = vxpose.xlu0.b32.cont [4/16] 0.0, 128
      %1139 = vxpose.xlu0.b32.cont [5/16] 0.0, 128
      %1140 = vxpose.xlu0.b32.cont [6/16] 0.0, 128
      %1141 = vxpose.xlu0.b32.cont [7/16] 0.0, 128
      %1142 = vxpose.xlu0.b32.cont [8/16] 0.0, 128
      %1143 = vxpose.xlu0.b32.cont [9/16] 0.0, 128
      %1144 = vxpose.xlu0.b32.cont [10/16] 0.0, 128
      %1145 = vxpose.xlu0.b32.cont [11/16] 0.0, 128
      %1146 = vxpose.xlu0.b32.cont [12/16] 0.0, 128
      %1147 = vxpose.xlu0.b32.cont [13/16] 0.0, 128
      %1148 = vxpose.xlu0.b32.cont [14/16] 0.0, 128
      %1149 = vxpose.xlu0.b32.cont [15/16] 0.0, 128
      %1150 = vxpose.xlu0.b32.end [16/16] 0.0, 128
      %v1151 = vpop.trf.xlu0
      %v1152 = vpop.trf.xlu0
      %v1153 = vpop.trf.xlu0
      %v1154 = vpop.trf.xlu0
      %v1155 = vpop.trf.xlu0
      %v1156 = vpop.trf.xlu0
      %v1157 = vpop.trf.xlu0
      %v1158 = vpop.trf.xlu0
      %v1159 = vpop.trf.xlu0
      %v1160 = vpop.trf.xlu0
      %v1161 = vpop.trf.xlu0
      %v1162 = vpop.trf.xlu0
      %v1163 = vpop.trf.xlu0
      %v1164 = vpop.trf.xlu0
      %v1165 = vpop.trf.xlu0
      %v1166 = vpop.trf.xlu0
      %1167 = vxpose.xlu0.b32.start [1/16] %v1099, 128
      %1168 = vxpose.xlu0.b32.cont [2/16] %v1100, 128
      %1169 = vxpose.xlu0.b32.cont [3/16] 0.0, 128
      %1170 = vxpose.xlu0.b32.cont [4/16] 0.0, 128
      %1171 = vxpose.xlu0.b32.cont [5/16] 0.0, 128
      %1172 = vxpose.xlu0.b32.cont [6/16] 0.0, 128
      %1173 = vxpose.xlu0.b32.cont [7/16] 0.0, 128
      %1174 = vxpose.xlu0.b32.cont [8/16] 0.0, 128
      %1175 = vxpose.xlu0.b32.cont [9/16] 0.0, 128
      %1176 = vxpose.xlu0.b32.cont [10/16] 0.0, 128
      %1177 = vxpose.xlu0.b32.cont [11/16] 0.0, 128
      %1178 = vxpose.xlu0.b32.cont [12/16] 0.0, 128
      %1179 = vxpose.xlu0.b32.cont [13/16] 0.0, 128
      %1180 = vxpose.xlu0.b32.cont [14/16] 0.0, 128
      %1181 = vxpose.xlu0.b32.cont [15/16] 0.0, 128
      %1182 = vxpose.xlu0.b32.end [16/16] 0.0, 128
      %v1183 = vpop.trf.xlu0
      %v1184 = vpop.trf.xlu0
      %v1185 = vpop.trf.xlu0
      %v1186 = vpop.trf.xlu0
      %v1187 = vpop.trf.xlu0
      %v1188 = vpop.trf.xlu0
      %v1189 = vpop.trf.xlu0
      %v1190 = vpop.trf.xlu0
      %v1191 = vpop.trf.xlu0
      %v1192 = vpop.trf.xlu0
      %v1193 = vpop.trf.xlu0
      %v1194 = vpop.trf.xlu0
      %v1195 = vpop.trf.xlu0
      %v1196 = vpop.trf.xlu0
      %v1197 = vpop.trf.xlu0
      %v1198 = vpop.trf.xlu0
      %1199 = vxpose.xlu0.b32.start [1/16] %v1101, 128
      %1200 = vxpose.xlu0.b32.cont [2/16] %v1102, 128
      %1201 = vxpose.xlu0.b32.cont [3/16] 0.0, 128
      %1202 = vxpose.xlu0.b32.cont [4/16] 0.0, 128
      %1203 = vxpose.xlu0.b32.cont [5/16] 0.0, 128
      %1204 = vxpose.xlu0.b32.cont [6/16] 0.0, 128
      %1205 = vxpose.xlu0.b32.cont [7/16] 0.0, 128
      %1206 = vxpose.xlu0.b32.cont [8/16] 0.0, 128
      %1207 = vxpose.xlu0.b32.cont [9/16] 0.0, 128
      %1208 = vxpose.xlu0.b32.cont [10/16] 0.0, 128
      %1209 = vxpose.xlu0.b32.cont [11/16] 0.0, 128
      %1210 = vxpose.xlu0.b32.cont [12/16] 0.0, 128
      %1211 = vxpose.xlu0.b32.cont [13/16] 0.0, 128
      %1212 = vxpose.xlu0.b32.cont [14/16] 0.0, 128
      %1213 = vxpose.xlu0.b32.cont [15/16] 0.0, 128
      %1214 = vxpose.xlu0.b32.end [16/16] 0.0, 128
      %v1215 = vpop.trf.xlu0
      %v1216 = vpop.trf.xlu0
      %v1217 = vpop.trf.xlu0
      %v1218 = vpop.trf.xlu0
      %v1219 = vpop.trf.xlu0
      %v1220 = vpop.trf.xlu0
      %v1221 = vpop.trf.xlu0
      %v1222 = vpop.trf.xlu0
      %v1223 = vpop.trf.xlu0
      %v1224 = vpop.trf.xlu0
      %v1225 = vpop.trf.xlu0
      %v1226 = vpop.trf.xlu0
      %v1227 = vpop.trf.xlu0
      %v1228 = vpop.trf.xlu0
      %v1229 = vpop.trf.xlu0
      %v1230 = vpop.trf.xlu0
      %1231 = vst.msk [vmem:[%s123] sm:$0xff] %vm634, %v1119
      %1232 = vst.msk [vmem:[%s123 + $0x8] sm:$0xff] %vm634, %v1120
      %1233 = vst.msk [vmem:[%s123 + $0x10] sm:$0xff] %vm634, %v1121
      %1234 = vst.msk [vmem:[%s123 + $0x18] sm:$0xff] %vm634, %v1122
      %1235 = vst.msk [vmem:[%s123 + $0x20] sm:$0xff] %vm634, %v1151
      %1236 = vst.msk [vmem:[%s123 + $0x28] sm:$0xff] %vm634, %v1152
      %1237 = vst.msk [vmem:[%s123 + $0x30] sm:$0xff] %vm634, %v1153
      %1238 = vst.msk [vmem:[%s123 + $0x38] sm:$0xff] %vm634, %v1154
      %1239 = vst.msk [vmem:[%s123 + $0x40] sm:$0xff] %vm634, %v1183
      %1240 = vst.msk [vmem:[%s123 + $0x48] sm:$0xff] %vm634, %v1184
      %1241 = vst.msk [vmem:[%s123 + $0x50] sm:$0xff] %vm634, %v1185
      %1242 = vst.msk [vmem:[%s123 + $0x58] sm:$0xff] %vm634, %v1186
      %1243 = vst.msk [vmem:[%s123 + $0x60] sm:$0xff] %vm634, %v1215
      %1244 = vst.msk [vmem:[%s123 + $0x68] sm:$0xff] %vm634, %v1216
      %1245 = vst.msk [vmem:[%s123 + $0x70] sm:$0xff] %vm634, %v1217
      %1246 = vst.msk [vmem:[%s123 + $0x78] sm:$0xff] %vm634, %v1218
      %s1247 = smul.u32 4, %s12
      %p1248 = scmp.lt.s32.totalorder %s1247, 7
      %s1249 = scalar_select %p1248, %s1247, 7
      %s1250 = smul.addr %s1249, 4
      %s1251 = smul.addr %s1250, 8
      %s1252 = scalar_lea.vmem %s1, %s1251
      // Predicated region
      $region25: #{tpu_custom_call.1} parent=23 // pred_check
        %p1253 = pneg %p56
      $region26: #{tpu_custom_call.1} parent=23 // pred_check_branch
        %1255 = sbr.rel (%p1253) target = $region28
      $region27: #{tpu_custom_call.1} parent=23 // pred_region
        %s1256 = smul.u32 4, %s12
      $region28: #{tpu_custom_call.1} parent=23 // pred_fallthru
        _
    $region24: #{tpu_custom_call.1} parent=5 // pred_fallthru
      _
    %p1257 = scmp.le.s32.totalorder 2, %s7
    // Predicated region
    $region29: #{tpu_custom_call.1} parent=5 // pred_check
      %p1258 = pneg %p1257
    $region30: #{tpu_custom_call.1} parent=5 // pred_check_branch
      %1260 = sbr.rel (%p1258) target = $region32
    $region31: #{tpu_custom_call.1} parent=5 // pred_region
      %s1261 = ssub.s32 %s7, 2
      // Predicated region
      $region33: #{tpu_custom_call.1} parent=31 // pred_check
        %p1262 = pneg %p62
      $region34: #{tpu_custom_call.1} parent=31 // pred_check_branch
        %1264 = sbr.rel (%p1262) target = $region36
      $region35: #{tpu_custom_call.1} parent=31 // pred_region
        %s1265 = smul.u32 4, %s13
        %p1266 = scmp.lt.s32.totalorder %s1265, 7
        %s1267 = scalar_select %p1266, %s1265, 7
        %s1268 = smul.addr %s1267, 4
        %s1269 = smul.addr %s1268, 8
        %s1270 = scalar_lea.vmem %s1, %s1269
      $region36: #{tpu_custom_call.1} parent=31 // pred_fallthru
        _
    $region32: #{tpu_custom_call.1} parent=5 // pred_fallthru
      _
  $region6: #{tpu_custom_call.1} parent=0 // loop_footer
    %s11 = sadd.s32 1, %s7
  $region7: #{tpu_custom_call.1} parent=0 // loop_footer_branch
    %6 = sbr.rel target = $region3
  $region8: #{tpu_custom_call.1} parent=0 // loop_exit
    _

</llo_original>
